<compile_context>
chip_gen: v7x
topology: tpu7x:2x2x1
jax: 0.10.0
libtpu: 0.0.40
codegen_flags: <defaults>
</compile_context>

<pallas_src>
import math
import functools

import jax
import jax.numpy as jnp
from jax import lax
from jax.experimental import pallas as pl
from jax.experimental.pallas import tpu as pltpu

_MASK_VALUE = -1e30


# ---------------------------------------------------------------------------
# helpers
# ---------------------------------------------------------------------------
def _round_up(x, m):
    return (x + m - 1) // m * m


def _layer_norm_f32(v, gamma, beta, eps=1e-5):
    """LayerNorm in float32 (biased variance), matching nn.LayerNorm(eps=1e-5)."""
    v = v.astype(jnp.float32)
    mu = jnp.mean(v, axis=-1, keepdims=True)
    var = jnp.mean((v - mu) ** 2, axis=-1, keepdims=True)
    return (v - mu) * lax.rsqrt(var + eps) * gamma + beta


def _vmem_budget_bytes():
    """~75% of physical VMEM, capped at 100 MiB.
    v7x (64 MiB physical) -> ~48 MiB, v5e/v6e (128 MiB) -> ~96 MiB."""
    cap = 64 * 1024 * 1024
    try:
        cap = int(pltpu.get_tpu_info().vmem_capacity_bytes)
    except Exception:
        pass
    return int(min(cap * 3 // 4, 100 * 1024 * 1024))


def _choose_tiles(T, D, n_mlp, n_head, itemsize, budget):
    """Pick token tile bt (shared by all kernels) and MLP hidden chunk bm so the
    largest per-kernel VMEM footprint (double-buffered pipeline blocks + scratch)
    fits the per-chip budget."""
    hd = D // n_head
    if T < 128:
        t_cands = [_round_up(max(T, 8), 8)]
    else:
        cands = [512, 256, 128]
        # prefer >=2 token tiles so the 'parallel' axes shard over both v7x TCs
        # even at batch 1 (Whisper encoder runs B=1).
        t_cands = [c for c in cands if _round_up(T, c) // c >= 2] or cands
    m_cands = [m for m in (1024, 512, 256, 128)
               if m <= n_mlp and n_mlp % m == 0] or [n_mlp]

    def k1_bytes(bt):   # LN1 + fused QKV
        return (2 * bt * D * 4 + 2 * 3 * D * D * itemsize + 3 * D * 4
                + 2 * 3 * bt * D * itemsize)

    def k2_bytes(bt):   # flash attention (m/l scratch lane-pads to 128)
        return (6 * n_head * bt * hd * itemsize + 2 * bt * D * itemsize
                + n_head * bt * hd * 4
                + 2 * n_head * _round_up(bt, 8) * 128 * 4)

    def k3_bytes(bt, bm):   # out-proj + LN2 + chunked MLP
        return (2 * bt * D * 4 + 2 * bt * D * itemsize + 2 * D * D * itemsize
                + 4 * D * bm * itemsize + 2 * bt * D * 4
                + bt * D * (8 + itemsize))

    for bt in t_cands:
        for bm in m_cands:
            if max(k1_bytes(bt), k2_bytes(bt), k3_bytes(bt, bm)) <= budget:
                return bt, bm
    return t_cands[-1], m_cands[-1]


# ---------------------------------------------------------------------------
# Kernel 1: LN1 + fused QKV projection, head-major outputs.
# ---------------------------------------------------------------------------
def _ln_qkv_kernel(x_ref, g_ref, b_ref, wqkv_ref, bqkv_ref, q_ref, k_ref, v_ref):
    n_head = q_ref.shape[1]
    hd = q_ref.shape[3]
    d = x_ref.shape[2]

    xn = _layer_norm_f32(x_ref[0], g_ref[0], b_ref[0])                 # (bt, D) f32
    qkv = jnp.dot(xn.astype(wqkv_ref.dtype), wqkv_ref[...],
                  preferred_element_type=jnp.float32) + bqkv_ref[0]    # (bt, 3D) f32
    # Split lanes into head-major (H, bt, hd) blocks (static lane slices -> XLU
    # work that rides under the MXU); scale is already folded into the Q columns.
    for h in range(n_head):
        q_ref[0, h] = qkv[:, h * hd:(h + 1) * hd].astype(q_ref.dtype)
        k_ref[0, h] = qkv[:, d + h * hd:d + (h + 1) * hd].astype(k_ref.dtype)
        v_ref[0, h] = qkv[:, 2 * d + h * hd:2 * d + (h + 1) * hd].astype(v_ref.dtype)


# ---------------------------------------------------------------------------
# Kernel 2: flash attention (heads batched), merges heads in its epilogue and
# writes a lane-dense (B, T, D) output block. Padded kv columns are masked.
# ---------------------------------------------------------------------------
def _flash_attn_kernel(q_ref, k_ref, v_ref, o_ref, m_sc, l_sc, acc_sc,
                       *, valid_len, masked, fast_exp):
    ki = pl.program_id(2)
    n_head = q_ref.shape[1]
    tk = k_ref.shape[2]

    @pl.when(ki == 0)
    def _():
        m_sc[...] = jnp.full_like(m_sc, -jnp.inf)
        l_sc[...] = jnp.zeros_like(l_sc)
        acc_sc[...] = jnp.zeros_like(acc_sc)

    q = q_ref[0]                    # (H, tq, hd), already scaled by 1/sqrt(hd)
    k = k_ref[0]                    # (H, tk, hd)
    v = v_ref[0]                    # (H, tk, hd)

    s = jnp.einsum("hqd,hkd->hqk", q, k, preferred_element_type=jnp.float32)
    if masked:                      # static: only emitted when padding exists
        col = lax.broadcasted_iota(jnp.int32, s.shape, 2) + ki * tk
        s = jnp.where(col < valid_len, s, _MASK_VALUE)

    m_prev = m_sc[...]
    m_new = jnp.maximum(m_prev, jnp.max(s, axis=-1, keepdims=True))
    alpha = jnp.exp(m_prev - m_new)
    if fast_exp:                    # bf16 exp on the EUP (inner loop is EUP-bound)
        p = jnp.exp((s - m_new).astype(jnp.bfloat16))
        l_inc = jnp.sum(p.astype(jnp.float32), axis=-1, keepdims=True)
    else:
        p = jnp.exp(s - m_new)
        l_inc = jnp.sum(p, axis=-1, keepdims=True)
    l_sc[...] = alpha * l_sc[...] + l_inc
    acc_sc[...] = alpha * acc_sc[...] + jnp.einsum(
        "hqk,hkd->hqd", p.astype(v.dtype), v, preferred_element_type=jnp.float32)
    m_sc[...] = m_new

    @pl.when(ki == pl.num_programs(2) - 1)
    def _():
        if fast_exp:
            inv_l = pl.reciprocal(l_sc[...], approx=True)
        else:
            inv_l = 1.0 / l_sc[...]
        out = acc_sc[...] * inv_l                                  # (H, tq, hd) f32
        merged = jnp.concatenate([out[h] for h in range(n_head)], axis=-1)
        o_ref[0] = merged.astype(o_ref.dtype)                      # lane-dense (tq, D)


# ---------------------------------------------------------------------------
# Kernel 3: out-projection + residual + LN2 + chunked MLP (exact GELU) + residual.
# ---------------------------------------------------------------------------
def _out_mlp_kernel(x_ref, a_ref, wo_ref, bo_ref, g2_ref, beta2_ref,
                    w1_ref, b1_ref, w2_ref, b2_ref, out_ref,
                    xres_sc, xn2_sc, acc_sc):
    c = pl.program_id(2)

    @pl.when(c == 0)
    def _():
        attn = jnp.dot(a_ref[0], wo_ref[...],
                       preferred_element_type=jnp.float32) + bo_ref[0]
        xres = x_ref[0].astype(jnp.float32) + attn                 # x + attention
        xres_sc[...] = xres
        xn2_sc[...] = _layer_norm_f32(xres, g2_ref[0], beta2_ref[0]).astype(xn2_sc.dtype)
        acc_sc[...] = jnp.zeros_like(acc_sc)

    h = jnp.dot(xn2_sc[...], w1_ref[...],
                preferred_element_type=jnp.float32) + b1_ref[0]
    h = 0.5 * h * (1.0 + lax.erf(h * (1.0 / math.sqrt(2.0))))      # exact GELU
    acc_sc[...] += jnp.dot(h.astype(w2_ref.dtype), w2_ref[...],
                           preferred_element_type=jnp.float32)

    @pl.when(c == pl.num_programs(2) - 1)
    def _():
        out_ref[0] = (xres_sc[...] + acc_sc[...] + b2_ref[0]).astype(out_ref.dtype)


# ---------------------------------------------------------------------------
# Wrapper
# ---------------------------------------------------------------------------
def residual_attention_block(x, params, n_head, *, compute_dtype=jnp.bfloat16,
                             block_t=None, block_mlp=None):
    """Forward of ResidualAttentionBlock (self-attention only, no mask/kv_cache).

    x: (B, T, D) float32.  params hold PyTorch-convention (out, in) f32 weights.
    Matmuls run in `compute_dtype` with f32 accumulation; LN/softmax stats in f32.
    """
    B, T, D = x.shape
    assert D % n_head == 0
    hd = D // n_head
    n_mlp = params["w1"].shape[0]

    cdt = compute_dtype
    itemsize = jnp.dtype(cdt).itemsize
    budget = _vmem_budget_bytes()
    fast_exp = jnp.dtype(cdt) == jnp.dtype(jnp.bfloat16)

    bt_auto, bm_auto = _choose_tiles(T, D, n_mlp, n_head, itemsize, budget)
    bt = block_t or bt_auto
    bm = block_mlp or bm_auto
    assert bt % 8 == 0, "token tile must be a multiple of 8"
    assert n_mlp % bm == 0 and (bm % 128 == 0 or bm == n_mlp)

    Tp = _round_up(T, bt)          # pad sequence to a tile multiple
    nt = Tp // bt
    nc = n_mlp // bm
    masked = Tp != T

    x_p = jnp.pad(x, ((0, 0), (0, Tp - T), (0, 0))) if masked else x

    # One-time weight prep: transpose to (in, out), fuse Q/K/V (K bias = 0),
    # fold 1/sqrt(hd) into the Q columns, cast matmul operands to compute dtype.
    scale = 1.0 / math.sqrt(hd)
    wqkv_t = jnp.concatenate(
        [params["wq"].T * scale, params["wk"].T, params["wv"].T], axis=1).astype(cdt)
    bqkv = jnp.concatenate(
        [params["bq"] * scale, jnp.zeros_like(params["bq"]), params["bv"]], axis=1)
    wo_t = params["wo"].T.astype(cdt)
    w1_t = params["w1"].T.astype(cdt)          # (D, n_mlp)
    w2_t = params["w2"].T.astype(cdt)          # (n_mlp, D)

    def cparams(sem):
        return pltpu.CompilerParams(dimension_semantics=sem,
                                    vmem_limit_bytes=budget)

    def const_spec(shape):
        zeros = (0,) * len(shape)
        return pl.BlockSpec(shape, lambda *_: zeros)

    # ---- 1) LN1 + fused QKV projection (head-major outputs) ------------------
    q, k, v = pl.pallas_call(
        _ln_qkv_kernel,
        out_shape=tuple(jax.ShapeDtypeStruct((B, n_head, Tp, hd), cdt)
                        for _ in range(3)),
        grid_spec=pltpu.PrefetchScalarGridSpec(
            num_scalar_prefetch=0,
            grid=(B, nt),
            in_specs=[
                pl.BlockSpec((1, bt, D), lambda b, i: (b, i, 0)),     # x tile
                const_spec((1, D)), const_spec((1, D)),               # ln1 gamma/beta
                const_spec((D, 3 * D)), const_spec((1, 3 * D)),       # fused Wqkv, bias
            ],
            out_specs=[pl.BlockSpec((1, n_head, bt, hd),
                                    lambda b, i: (b, 0, i, 0))] * 3,
        ),
        compiler_params=cparams(("parallel", "parallel")),
        cost_estimate=pl.CostEstimate(
            flops=int(6 * B * Tp * D * D),
            transcendentals=int(B * Tp),
            bytes_accessed=int(4 * B * Tp * D + (3 * D * D + 3 * B * Tp * D) * itemsize
                               + 3 * D * 4)),
    )(x_p, params["ln1_g"], params["ln1_b"], wqkv_t, bqkv)

    # ---- 2) flash attention over kv tiles, heads merged in-kernel ------------
    attn = pl.pallas_call(
        functools.partial(_flash_attn_kernel, valid_len=T, masked=masked,
                          fast_exp=fast_exp),
        out_shape=jax.ShapeDtypeStruct((B, Tp, D), cdt),
        grid_spec=pltpu.PrefetchScalarGridSpec(
            num_scalar_prefetch=0,
            grid=(B, nt, nt),
            in_specs=[
                pl.BlockSpec((1, n_head, bt, hd), lambda b, qi, ki: (b, 0, qi, 0)),
                pl.BlockSpec((1, n_head, bt, hd), lambda b, qi, ki: (b, 0, ki, 0)),
                pl.BlockSpec((1, n_head, bt, hd), lambda b, qi, ki: (b, 0, ki, 0)),
            ],
            out_specs=pl.BlockSpec((1, bt, D), lambda b, qi, ki: (b, qi, 0)),
            scratch_shapes=[pltpu.VMEM((n_head, bt, 1), jnp.float32),   # m
                            pltpu.VMEM((n_head, bt, 1), jnp.float32),   # l
                            pltpu.VMEM((n_head, bt, hd), jnp.float32)], # acc
        ),
        compiler_params=cparams(("parallel", "parallel", "arbitrary")),
        cost_estimate=pl.CostEstimate(
            flops=int(4 * B * Tp * Tp * D),
            transcendentals=int(B * n_head * Tp * Tp),
            bytes_accessed=int((2 * nt + 2) * B * Tp * D * itemsize)),
    )(q, k, v)

    # ---- 3) out-proj + residual + LN2 + chunked MLP + residual ---------------
    out = pl.pallas_call(
        _out_mlp_kernel,
        out_shape=jax.ShapeDtypeStruct((B, Tp, D), jnp.float32),
        grid_spec=pltpu.PrefetchScalarGridSpec(
            num_scalar_prefetch=0,
            grid=(B, nt, nc),
            in_specs=[
                pl.BlockSpec((1, bt, D), lambda b, i, c: (b, i, 0)),   # x tile
                pl.BlockSpec((1, bt, D), lambda b, i, c: (b, i, 0)),   # attn tile
                const_spec((D, D)), const_spec((1, D)),                # Wo^T, bo
                const_spec((1, D)), const_spec((1, D)),                # ln2 gamma/beta
                pl.BlockSpec((D, bm), lambda b, i, c: (0, c)),         # W1^T chunk
                pl.BlockSpec((1, bm), lambda b, i, c: (0, c)),         # b1 chunk
                pl.BlockSpec((bm, D), lambda b, i, c: (c, 0)),         # W2^T chunk
                const_spec((1, D)),                                    # b2
            ],
            out_specs=pl.BlockSpec((1, bt, D), lambda b, i, c: (b, i, 0)),
            scratch_shapes=[pltpu.VMEM((bt, D), jnp.float32),   # x + attn_out
                            pltpu.VMEM((bt, D), cdt),           # LN2(x), compute dtype
                            pltpu.VMEM((bt, D), jnp.float32)],  # MLP accumulator
        ),
        compiler_params=cparams(("parallel", "parallel", "arbitrary")),
        cost_estimate=pl.CostEstimate(
            flops=int(2 * B * Tp * D * D + 4 * B * Tp * D * n_mlp),
            transcendentals=int(B * Tp * n_mlp),
            bytes_accessed=int(8 * B * Tp * D + B * Tp * D * itemsize
                               + D * D * itemsize
                               + B * nt * 2 * D * n_mlp * itemsize)),
    )(x_p, attn, wo_t, params["bo"], params["ln2_g"], params["ln2_b"],
      w1_t, params["b1"], w2_t, params["b2"])

    return out[:, :T] if masked else out


# ---------------------------------------------------------------------------
# Pure-JAX reference mirroring the PyTorch forward.
# ---------------------------------------------------------------------------
def _reference(x, p, n_head):
    B, T, D = x.shape
    hd = D // n_head

    def ln(v, g, b):
        mu = jnp.mean(v, -1, keepdims=True)
        var = jnp.mean((v - mu) ** 2, -1, keepdims=True)
        return (v - mu) / jnp.sqrt(var + 1e-5) * g + b

    xn = ln(x, p["ln1_g"][0], p["ln1_b"][0])
    q = xn @ p["wq"].T + p["bq"][0]
    k = xn @ p["wk"].T
    v = xn @ p["wv"].T + p["bv"][0]
    qh = q.reshape(B, T, n_head, hd).transpose(0, 2, 1, 3)
    kh = k.reshape(B, T, n_head, hd).transpose(0, 2, 1, 3)
    vh = v.reshape(B, T, n_head, hd).transpose(0, 2, 1, 3)
    s = jnp.einsum("bhqd,bhkd->bhqk", qh, kh) / math.sqrt(hd)
    a = jax.nn.softmax(s, axis=-1)
    o = jnp.einsum("bhqk,bhkd->bhqd", a, vh).transpose(0, 2, 1, 3).reshape(B, T, D)
    x = x + o @ p["wo"].T + p["bo"][0]
    xn2 = ln(x, p["ln2_g"][0], p["ln2_b"][0])
    h1 = xn2 @ p["w1"].T + p["b1"][0]
    h1 = 0.5 * h1 * (1.0 + lax.erf(h1 / math.sqrt(2.0)))
    return x + h1 @ p["w2"].T + p["b2"][0]


if __name__ == "__main__":
    # Small shapes that still exercise the tiled structure: T=12 pads to 16 so the
    # kv-masking path runs, 2 token / kv tiles (bt=8), 2 MLP hidden chunks.
    B, T, D, H = 2, 12, 64, 4
    n_mlp = 4 * D

    key = jax.random.PRNGKey(0)
    ks = jax.random.split(key, 16)
    nrm = lambda k, s, sc=0.05: (sc * jax.random.normal(k, s)).astype(jnp.float32)

    params = {
        "ln1_g": jnp.ones((1, D), jnp.float32),
        "ln1_b": jnp.zeros((1, D), jnp.float32),
        "wq": nrm(ks[0], (D, D)), "bq": nrm(ks[1], (1, D)),
        "wk": nrm(ks[2], (D, D)),
        "wv": nrm(ks[3], (D, D)), "bv": nrm(ks[4], (1, D)),
        "wo": nrm(ks[5], (D, D)), "bo": nrm(ks[6], (1, D)),
        "ln2_g": jnp.ones((1, D), jnp.float32),
        "ln2_b": jnp.zeros((1, D), jnp.float32),
        "w1": nrm(ks[7], (n_mlp, D)), "b1": nrm(ks[8], (1, n_mlp)),
        "w2": nrm(ks[9], (D, n_mlp)), "b2": nrm(ks[10], (1, D)),
    }

    x = jax.random.normal(ks[11], (B, T, D), dtype=jnp.float32)
    ref = _reference(x, params, H)

    # Optimized bf16 path with explicit small tiles (padding + kv masking exercised).
    out_bf16 = jax.block_until_ready(
        residual_attention_block(x, params, n_head=H,
                                 compute_dtype=jnp.bfloat16,
                                 block_t=8, block_mlp=128))
    assert out_bf16.shape == (B, T, D)
    assert jnp.allclose(out_bf16, ref, atol=3e-2, rtol=3e-2), "bf16 path mismatch"

    # Auto tile/VMEM-budget selection path.
    out_auto = jax.block_until_ready(
        residual_attention_block(x, params, n_head=H, compute_dtype=jnp.bfloat16))
    assert out_auto.shape == (B, T, D)
    assert jnp.allclose(out_auto, ref, atol=3e-2, rtol=3e-2), "auto-tiled path mismatch"

    # Full-f32 path for strict numerical parity with the PyTorch module.
    out_f32 = jax.block_until_ready(
        residual_attention_block(x, params, n_head=H,
                                 compute_dtype=jnp.float32,
                                 block_t=8, block_mlp=128))
    assert out_f32.shape == (B, T, D)
    assert jnp.allclose(out_f32, ref, atol=5e-4, rtol=5e-4), "f32 path mismatch"

    print("KERNEL_OK")
</pallas_src>

<mosaic_0001>
module attributes {stable_mosaic.version = 11 : i64} {
  func.func @_ln_qkv_kernel(%arg0: i32, %arg1: i32, %arg2: memref<1x8x64xf32, #tpu.memory_space<vmem>>, %arg3: memref<1x64xf32, #tpu.memory_space<vmem>>, %arg4: memref<1x64xf32, #tpu.memory_space<vmem>>, %arg5: memref<64x192xbf16, #tpu.memory_space<vmem>>, %arg6: memref<1x192xf32, #tpu.memory_space<vmem>>, %arg7: memref<1x4x8x16xbf16, #tpu.memory_space<vmem>>, %arg8: memref<1x4x8x16xbf16, #tpu.memory_space<vmem>>, %arg9: memref<1x4x8x16xbf16, #tpu.memory_space<vmem>>) attributes {dimension_semantics = [#tpu.dimension_semantics<parallel>, #tpu.dimension_semantics<parallel>], iteration_bounds = array<i64: 2, 2>, scalar_prefetch = 0 : i64, scratch_operands = 0 : i64, tpu.core_type = #tpu.core_type<tc>, window_params = [{transform_indices = @transform_0, window_bounds = array<i64: 1, 8, 64>}, {pipeline_mode = #tpu.pipeline_mode<synchronous>, transform_indices = @transform_1, window_bounds = array<i64: 1, 64>}, {pipeline_mode = #tpu.pipeline_mode<synchronous>, transform_indices = @transform_2, window_bounds = array<i64: 1, 64>}, {pipeline_mode = #tpu.pipeline_mode<synchronous>, transform_indices = @transform_3, window_bounds = array<i64: 64, 192>}, {pipeline_mode = #tpu.pipeline_mode<synchronous>, transform_indices = @transform_4, window_bounds = array<i64: 1, 192>}, {transform_indices = @transform_5, window_bounds = array<i64: 1, 4, 8, 16>}, {transform_indices = @transform_6, window_bounds = array<i64: 1, 4, 8, 16>}, {transform_indices = @transform_7, window_bounds = array<i64: 1, 4, 8, 16>}]} {
    %c0 = arith.constant 0 : index
    %c0_0 = arith.constant 0 : index
    %c0_1 = arith.constant 0 : index
    %0 = vector.load %arg2[%c0, %c0_0, %c0_1] : memref<1x8x64xf32, #tpu.memory_space<vmem>>, vector<1x8x64xf32>
    %1 = vector.shape_cast %0 : vector<1x8x64xf32> to vector<8x64xf32>
    %c0_2 = arith.constant 0 : index
    %c0_3 = arith.constant 0 : index
    %2 = vector.load %arg3[%c0_2, %c0_3] : memref<1x64xf32, #tpu.memory_space<vmem>>, vector<1x64xf32>
    %3 = vector.shape_cast %2 : vector<1x64xf32> to vector<64xf32>
    %c0_4 = arith.constant 0 : index
    %c0_5 = arith.constant 0 : index
    %4 = vector.load %arg4[%c0_4, %c0_5] : memref<1x64xf32, #tpu.memory_space<vmem>>, vector<1x64xf32>
    %5 = vector.shape_cast %4 : vector<1x64xf32> to vector<64xf32>
    %cst = arith.constant dense<0.000000e+00> : vector<8xf32>
    %6 = vector.multi_reduction <add>, %1, %cst [1] : vector<8x64xf32> to vector<8xf32>
    %7 = vector.shape_cast %6 : vector<8xf32> to vector<8x1xf32>
    %cst_6 = arith.constant 6.400000e+01 : f32
    %8 = vector.broadcast %cst_6 : f32 to vector<8x1xf32>
    %9 = arith.divf %7, %8 : vector<8x1xf32>
    %10 = vector.broadcast %9 : vector<8x1xf32> to vector<8x64xf32>
    %11 = arith.subf %1, %10 : vector<8x64xf32>
    %12 = arith.mulf %11, %11 : vector<8x64xf32>
    %cst_7 = arith.constant dense<0.000000e+00> : vector<8xf32>
    %13 = vector.multi_reduction <add>, %12, %cst_7 [1] : vector<8x64xf32> to vector<8xf32>
    %14 = vector.shape_cast %13 : vector<8xf32> to vector<8x1xf32>
    %cst_8 = arith.constant 6.400000e+01 : f32
    %15 = vector.broadcast %cst_8 : f32 to vector<8x1xf32>
    %16 = arith.divf %14, %15 : vector<8x1xf32>
    %17 = vector.broadcast %9 : vector<8x1xf32> to vector<8x64xf32>
    %18 = arith.subf %1, %17 : vector<8x64xf32>
    %cst_9 = arith.constant 9.99999974E-6 : f32
    %19 = vector.broadcast %cst_9 : f32 to vector<8x1xf32>
    %20 = arith.addf %16, %19 : vector<8x1xf32>
    %21 = math.rsqrt %20 : vector<8x1xf32>
    %22 = vector.broadcast %21 : vector<8x1xf32> to vector<8x64xf32>
    %23 = arith.mulf %18, %22 : vector<8x64xf32>
    %24 = vector.shape_cast %3 : vector<64xf32> to vector<1x64xf32>
    %25 = vector.broadcast %24 : vector<1x64xf32> to vector<8x64xf32>
    %26 = arith.mulf %23, %25 : vector<8x64xf32>
    %27 = vector.shape_cast %5 : vector<64xf32> to vector<1x64xf32>
    %28 = vector.broadcast %27 : vector<1x64xf32> to vector<8x64xf32>
    %29 = arith.addf %26, %28 : vector<8x64xf32>
    %30 = arith.truncf %29 : vector<8x64xf32> to vector<8x64xbf16>
    %c0_10 = arith.constant 0 : index
    %c0_11 = arith.constant 0 : index
    %31 = vector.load %arg5[%c0_10, %c0_11] : memref<64x192xbf16, #tpu.memory_space<vmem>>, vector<64x192xbf16>
    %cst_12 = arith.constant dense<0.000000e+00> : vector<8x192xf32>
    %32 = tpu.matmul %30, %31, %cst_12 {dimension_numbers = #tpu.dot_dimension_numbers<[1], [0], [0], [1], [0, 0, 1, 1], [], []>} : vector<8x64xbf16>, vector<64x192xbf16>, vector<8x192xf32> -> vector<8x192xf32>
    %c0_13 = arith.constant 0 : index
    %c0_14 = arith.constant 0 : index
    %33 = vector.load %arg6[%c0_13, %c0_14] : memref<1x192xf32, #tpu.memory_space<vmem>>, vector<1x192xf32>
    %34 = vector.shape_cast %33 : vector<1x192xf32> to vector<192xf32>
    %35 = vector.shape_cast %34 : vector<192xf32> to vector<1x192xf32>
    %36 = vector.broadcast %35 : vector<1x192xf32> to vector<8x192xf32>
    %37 = arith.addf %32, %36 : vector<8x192xf32>
    %38 = vector.extract_strided_slice %37 {offsets = [0, 0], sizes = [8, 16], strides = [1, 1]} : vector<8x192xf32> to vector<8x16xf32>
    %39 = arith.truncf %38 : vector<8x16xf32> to vector<8x16xbf16>
    %c0_15 = arith.constant 0 : index
    %c0_16 = arith.constant 0 : index
    %c0_17 = arith.constant 0 : index
    %c0_18 = arith.constant 0 : index
    %40 = vector.load %arg7[%c0_15, %c0_16, %c0_17, %c0_18] : memref<1x4x8x16xbf16, #tpu.memory_space<vmem>>, vector<1x1x8x16xbf16>
    %41 = vector.shape_cast %40 : vector<1x1x8x16xbf16> to vector<8x16xbf16>
    %42 = vector.shape_cast %39 : vector<8x16xbf16> to vector<1x1x8x16xbf16>
    tpu.vector_store %arg7[%c0_15, %c0_16, %c0_17, %c0_18], %42 {strides = array<i32>} : memref<1x4x8x16xbf16, #tpu.memory_space<vmem>>, vector<1x1x8x16xbf16>,
    %43 = vector.extract_strided_slice %37 {offsets = [0, 64], sizes = [8, 16], strides = [1, 1]} : vector<8x192xf32> to vector<8x16xf32>
    %44 = arith.truncf %43 : vector<8x16xf32> to vector<8x16xbf16>
    %c0_19 = arith.constant 0 : index
    %c0_20 = arith.constant 0 : index
    %c0_21 = arith.constant 0 : index
    %c0_22 = arith.constant 0 : index
    %45 = vector.load %arg8[%c0_19, %c0_20, %c0_21, %c0_22] : memref<1x4x8x16xbf16, #tpu.memory_space<vmem>>, vector<1x1x8x16xbf16>
    %46 = vector.shape_cast %45 : vector<1x1x8x16xbf16> to vector<8x16xbf16>
    %47 = vector.shape_cast %44 : vector<8x16xbf16> to vector<1x1x8x16xbf16>
    tpu.vector_store %arg8[%c0_19, %c0_20, %c0_21, %c0_22], %47 {strides = array<i32>} : memref<1x4x8x16xbf16, #tpu.memory_space<vmem>>, vector<1x1x8x16xbf16>,
    %48 = vector.extract_strided_slice %37 {offsets = [0, 128], sizes = [8, 16], strides = [1, 1]} : vector<8x192xf32> to vector<8x16xf32>
    %49 = arith.truncf %48 : vector<8x16xf32> to vector<8x16xbf16>
    %c0_23 = arith.constant 0 : index
    %c0_24 = arith.constant 0 : index
    %c0_25 = arith.constant 0 : index
    %c0_26 = arith.constant 0 : index
    %50 = vector.load %arg9[%c0_23, %c0_24, %c0_25, %c0_26] : memref<1x4x8x16xbf16, #tpu.memory_space<vmem>>, vector<1x1x8x16xbf16>
    %51 = vector.shape_cast %50 : vector<1x1x8x16xbf16> to vector<8x16xbf16>
    %52 = vector.shape_cast %49 : vector<8x16xbf16> to vector<1x1x8x16xbf16>
    tpu.vector_store %arg9[%c0_23, %c0_24, %c0_25, %c0_26], %52 {strides = array<i32>} : memref<1x4x8x16xbf16, #tpu.memory_space<vmem>>, vector<1x1x8x16xbf16>,
    %53 = vector.extract_strided_slice %37 {offsets = [0, 16], sizes = [8, 16], strides = [1, 1]} : vector<8x192xf32> to vector<8x16xf32>
    %54 = arith.truncf %53 : vector<8x16xf32> to vector<8x16xbf16>
    %c0_27 = arith.constant 0 : index
    %c1 = arith.constant 1 : index
    %c0_28 = arith.constant 0 : index
    %c0_29 = arith.constant 0 : index
    %55 = vector.load %arg7[%c0_27, %c1, %c0_28, %c0_29] : memref<1x4x8x16xbf16, #tpu.memory_space<vmem>>, vector<1x1x8x16xbf16>
    %56 = vector.shape_cast %55 : vector<1x1x8x16xbf16> to vector<8x16xbf16>
    %57 = vector.shape_cast %54 : vector<8x16xbf16> to vector<1x1x8x16xbf16>
    tpu.vector_store %arg7[%c0_27, %c1, %c0_28, %c0_29], %57 {strides = array<i32>} : memref<1x4x8x16xbf16, #tpu.memory_space<vmem>>, vector<1x1x8x16xbf16>,
    %58 = vector.extract_strided_slice %37 {offsets = [0, 80], sizes = [8, 16], strides = [1, 1]} : vector<8x192xf32> to vector<8x16xf32>
    %59 = arith.truncf %58 : vector<8x16xf32> to vector<8x16xbf16>
    %c0_30 = arith.constant 0 : index
    %c1_31 = arith.constant 1 : index
    %c0_32 = arith.constant 0 : index
    %c0_33 = arith.constant 0 : index
    %60 = vector.load %arg8[%c0_30, %c1_31, %c0_32, %c0_33] : memref<1x4x8x16xbf16, #tpu.memory_space<vmem>>, vector<1x1x8x16xbf16>
    %61 = vector.shape_cast %60 : vector<1x1x8x16xbf16> to vector<8x16xbf16>
    %62 = vector.shape_cast %59 : vector<8x16xbf16> to vector<1x1x8x16xbf16>
    tpu.vector_store %arg8[%c0_30, %c1_31, %c0_32, %c0_33], %62 {strides = array<i32>} : memref<1x4x8x16xbf16, #tpu.memory_space<vmem>>, vector<1x1x8x16xbf16>,
    %63 = vector.extract_strided_slice %37 {offsets = [0, 144], sizes = [8, 16], strides = [1, 1]} : vector<8x192xf32> to vector<8x16xf32>
    %64 = arith.truncf %63 : vector<8x16xf32> to vector<8x16xbf16>
    %c0_34 = arith.constant 0 : index
    %c1_35 = arith.constant 1 : index
    %c0_36 = arith.constant 0 : index
    %c0_37 = arith.constant 0 : index
    %65 = vector.load %arg9[%c0_34, %c1_35, %c0_36, %c0_37] : memref<1x4x8x16xbf16, #tpu.memory_space<vmem>>, vector<1x1x8x16xbf16>
    %66 = vector.shape_cast %65 : vector<1x1x8x16xbf16> to vector<8x16xbf16>
    %67 = vector.shape_cast %64 : vector<8x16xbf16> to vector<1x1x8x16xbf16>
    tpu.vector_store %arg9[%c0_34, %c1_35, %c0_36, %c0_37], %67 {strides = array<i32>} : memref<1x4x8x16xbf16, #tpu.memory_space<vmem>>, vector<1x1x8x16xbf16>,
    %68 = vector.extract_strided_slice %37 {offsets = [0, 32], sizes = [8, 16], strides = [1, 1]} : vector<8x192xf32> to vector<8x16xf32>
    %69 = arith.truncf %68 : vector<8x16xf32> to vector<8x16xbf16>
    %c0_38 = arith.constant 0 : index
    %c2 = arith.constant 2 : index
    %c0_39 = arith.constant 0 : index
    %c0_40 = arith.constant 0 : index
    %70 = vector.load %arg7[%c0_38, %c2, %c0_39, %c0_40] : memref<1x4x8x16xbf16, #tpu.memory_space<vmem>>, vector<1x1x8x16xbf16>
    %71 = vector.shape_cast %70 : vector<1x1x8x16xbf16> to vector<8x16xbf16>
    %72 = vector.shape_cast %69 : vector<8x16xbf16> to vector<1x1x8x16xbf16>
    tpu.vector_store %arg7[%c0_38, %c2, %c0_39, %c0_40], %72 {strides = array<i32>} : memref<1x4x8x16xbf16, #tpu.memory_space<vmem>>, vector<1x1x8x16xbf16>,
    %73 = vector.extract_strided_slice %37 {offsets = [0, 96], sizes = [8, 16], strides = [1, 1]} : vector<8x192xf32> to vector<8x16xf32>
    %74 = arith.truncf %73 : vector<8x16xf32> to vector<8x16xbf16>
    %c0_41 = arith.constant 0 : index
    %c2_42 = arith.constant 2 : index
    %c0_43 = arith.constant 0 : index
    %c0_44 = arith.constant 0 : index
    %75 = vector.load %arg8[%c0_41, %c2_42, %c0_43, %c0_44] : memref<1x4x8x16xbf16, #tpu.memory_space<vmem>>, vector<1x1x8x16xbf16>
    %76 = vector.shape_cast %75 : vector<1x1x8x16xbf16> to vector<8x16xbf16>
    %77 = vector.shape_cast %74 : vector<8x16xbf16> to vector<1x1x8x16xbf16>
    tpu.vector_store %arg8[%c0_41, %c2_42, %c0_43, %c0_44], %77 {strides = array<i32>} : memref<1x4x8x16xbf16, #tpu.memory_space<vmem>>, vector<1x1x8x16xbf16>,
    %78 = vector.extract_strided_slice %37 {offsets = [0, 160], sizes = [8, 16], strides = [1, 1]} : vector<8x192xf32> to vector<8x16xf32>
    %79 = arith.truncf %78 : vector<8x16xf32> to vector<8x16xbf16>
    %c0_45 = arith.constant 0 : index
    %c2_46 = arith.constant 2 : index
    %c0_47 = arith.constant 0 : index
    %c0_48 = arith.constant 0 : index
    %80 = vector.load %arg9[%c0_45, %c2_46, %c0_47, %c0_48] : memref<1x4x8x16xbf16, #tpu.memory_space<vmem>>, vector<1x1x8x16xbf16>
    %81 = vector.shape_cast %80 : vector<1x1x8x16xbf16> to vector<8x16xbf16>
    %82 = vector.shape_cast %79 : vector<8x16xbf16> to vector<1x1x8x16xbf16>
    tpu.vector_store %arg9[%c0_45, %c2_46, %c0_47, %c0_48], %82 {strides = array<i32>} : memref<1x4x8x16xbf16, #tpu.memory_space<vmem>>, vector<1x1x8x16xbf16>,
    %83 = vector.extract_strided_slice %37 {offsets = [0, 48], sizes = [8, 16], strides = [1, 1]} : vector<8x192xf32> to vector<8x16xf32>
    %84 = arith.truncf %83 : vector<8x16xf32> to vector<8x16xbf16>
    %c0_49 = arith.constant 0 : index
    %c3 = arith.constant 3 : index
    %c0_50 = arith.constant 0 : index
    %c0_51 = arith.constant 0 : index
    %85 = vector.load %arg7[%c0_49, %c3, %c0_50, %c0_51] : memref<1x4x8x16xbf16, #tpu.memory_space<vmem>>, vector<1x1x8x16xbf16>
    %86 = vector.shape_cast %85 : vector<1x1x8x16xbf16> to vector<8x16xbf16>
    %87 = vector.shape_cast %84 : vector<8x16xbf16> to vector<1x1x8x16xbf16>
    tpu.vector_store %arg7[%c0_49, %c3, %c0_50, %c0_51], %87 {strides = array<i32>} : memref<1x4x8x16xbf16, #tpu.memory_space<vmem>>, vector<1x1x8x16xbf16>,
    %88 = vector.extract_strided_slice %37 {offsets = [0, 112], sizes = [8, 16], strides = [1, 1]} : vector<8x192xf32> to vector<8x16xf32>
    %89 = arith.truncf %88 : vector<8x16xf32> to vector<8x16xbf16>
    %c0_52 = arith.constant 0 : index
    %c3_53 = arith.constant 3 : index
    %c0_54 = arith.constant 0 : index
    %c0_55 = arith.constant 0 : index
    %90 = vector.load %arg8[%c0_52, %c3_53, %c0_54, %c0_55] : memref<1x4x8x16xbf16, #tpu.memory_space<vmem>>, vector<1x1x8x16xbf16>
    %91 = vector.shape_cast %90 : vector<1x1x8x16xbf16> to vector<8x16xbf16>
    %92 = vector.shape_cast %89 : vector<8x16xbf16> to vector<1x1x8x16xbf16>
    tpu.vector_store %arg8[%c0_52, %c3_53, %c0_54, %c0_55], %92 {strides = array<i32>} : memref<1x4x8x16xbf16, #tpu.memory_space<vmem>>, vector<1x1x8x16xbf16>,
    %93 = vector.extract_strided_slice %37 {offsets = [0, 176], sizes = [8, 16], strides = [1, 1]} : vector<8x192xf32> to vector<8x16xf32>
    %94 = arith.truncf %93 : vector<8x16xf32> to vector<8x16xbf16>
    %c0_56 = arith.constant 0 : index
    %c3_57 = arith.constant 3 : index
    %c0_58 = arith.constant 0 : index
    %c0_59 = arith.constant 0 : index
    %95 = vector.load %arg9[%c0_56, %c3_57, %c0_58, %c0_59] : memref<1x4x8x16xbf16, #tpu.memory_space<vmem>>, vector<1x1x8x16xbf16>
    %96 = vector.shape_cast %95 : vector<1x1x8x16xbf16> to vector<8x16xbf16>
    %97 = vector.shape_cast %94 : vector<8x16xbf16> to vector<1x1x8x16xbf16>
    tpu.vector_store %arg9[%c0_56, %c3_57, %c0_58, %c0_59], %97 {strides = array<i32>} : memref<1x4x8x16xbf16, #tpu.memory_space<vmem>>, vector<1x1x8x16xbf16>,
    return
  }
  func.func @transform_0(%arg0: i32, %arg1: i32) -> (i32, i32, i32) {
    %c0_i32 = arith.constant 0 : i32
    %c0_i32_0 = arith.constant 0 : i32
    return %arg0, %arg1, %c0_i32 : i32, i32, i32
  }
  func.func @transform_1(%arg0: i32, %arg1: i32) -> (i32, i32) {
    %c0_i32 = arith.constant 0 : i32
    %c0_i32_0 = arith.constant 0 : i32
    %c0_i32_1 = arith.constant 0 : i32
    return %c0_i32, %c0_i32_0 : i32, i32
  }
  func.func @transform_2(%arg0: i32, %arg1: i32) -> (i32, i32) {
    %c0_i32 = arith.constant 0 : i32
    %c0_i32_0 = arith.constant 0 : i32
    %c0_i32_1 = arith.constant 0 : i32
    return %c0_i32, %c0_i32_0 : i32, i32
  }
  func.func @transform_3(%arg0: i32, %arg1: i32) -> (i32, i32) {
    %c0_i32 = arith.constant 0 : i32
    %c0_i32_0 = arith.constant 0 : i32
    %c0_i32_1 = arith.constant 0 : i32
    return %c0_i32, %c0_i32_0 : i32, i32
  }
  func.func @transform_4(%arg0: i32, %arg1: i32) -> (i32, i32) {
    %c0_i32 = arith.constant 0 : i32
    %c0_i32_0 = arith.constant 0 : i32
    %c0_i32_1 = arith.constant 0 : i32
    return %c0_i32, %c0_i32_0 : i32, i32
  }
  func.func @transform_5(%arg0: i32, %arg1: i32) -> (i32, i32, i32, i32) {
    %c0_i32 = arith.constant 0 : i32
    %c0_i32_0 = arith.constant 0 : i32
    %c0_i32_1 = arith.constant 0 : i32
    return %arg0, %c0_i32, %arg1, %c0_i32_0 : i32, i32, i32, i32
  }
  func.func @transform_6(%arg0: i32, %arg1: i32) -> (i32, i32, i32, i32) {
    %c0_i32 = arith.constant 0 : i32
    %c0_i32_0 = arith.constant 0 : i32
    %c0_i32_1 = arith.constant 0 : i32
    return %arg0, %c0_i32, %arg1, %c0_i32_0 : i32, i32, i32, i32
  }
  func.func @transform_7(%arg0: i32, %arg1: i32) -> (i32, i32, i32, i32) {
    %c0_i32 = arith.constant 0 : i32
    %c0_i32_0 = arith.constant 0 : i32
    %c0_i32_1 = arith.constant 0 : i32
    return %arg0, %c0_i32, %arg1, %c0_i32_0 : i32, i32, i32, i32
  }
}

</mosaic_0001>

<llo_original>
// kernel: tpu_custom_call.1
$region0: #{tpu_custom_call.1}
  #allocation0 [shape = 'u32[]', space=smem, size = 0x4, offset = 0x4, fixed_abs, tag = 'smem constant byte address 0x4 - core index']
  #allocation1 [shape = 'u32[144,128]{1,0:T(1,128)}', space=vmem, size = 0x12000, scoped, tag = 'internal scratch']
  %s0 = inlined_call_operand.hbm [shape: f32[2,16,64], index: 0, kind: input, shape index: {}]
  %s1 = inlined_call_operand.vmem [shape: f32[1,64], index: 1, kind: input, shape index: {}]
  %s2 = inlined_call_operand.vmem [shape: f32[1,64], index: 2, kind: input, shape index: {}]
  %s3 = inlined_call_operand.hbm [shape: bf16[64,192], index: 3, kind: input, shape index: {}]
  %s4 = inlined_call_operand.vmem [shape: f32[1,192], index: 4, kind: input, shape index: {}]
  %s5 = inlined_call_operand.hbm [shape: bf16[2,4,16,16], index: 5, kind: output, shape index: {0}]
  %s6 = inlined_call_operand.hbm [shape: bf16[2,4,16,16], index: 6, kind: output, shape index: {1}]
  %s7 = inlined_call_operand.hbm [shape: bf16[2,4,16,16], index: 7, kind: output, shape index: {2}]
  %8 = xla_tuple %s5, %s6, %s7
  %s9 = sld [smem:[#allocation0]]
  $region77: #{tpu_custom_call.1} parent=0
    _
  %s11 = ssub.s32 1, %s9
  %s12 = scalar_select 0, %s11, %s9
  $region1: #{tpu_custom_call.1} parent=0
    #allocation2 [shape = 'u8[8192]{0}', space=vmem, size = 0x2000, scoped, tag = 'input window, operand 0']
    #allocation3 [shape = 's32[2]{0}', space=sflag, size = 0x8, scoped, tag = 'scoped memory for tpu_custom_call.1']
    #allocation4 [shape = 's32[2]{0}', space=sflag, size = 0x8, scoped, tag = 'scoped memory for tpu_custom_call.1']
    #allocation5 [shape = 'u8[32768]{0}', space=vmem, size = 0x8000, scoped, tag = 'input window, operand 3, single buffered']
    #allocation6 [shape = 's32[1]{0}', space=sflag, size = 0x4, scoped, tag = 'scoped memory for tpu_custom_call.1']
    #allocation7 [shape = 'u8[16384]{0}', space=vmem, size = 0x4000, scoped, tag = 'output window, operand 0']
    #allocation8 [shape = 'u8[16384]{0}', space=vmem, size = 0x4000, scoped, tag = 'output window, operand 1']
    #allocation9 [shape = 's32[2]{0}', space=sflag, size = 0x8, scoped, tag = 'scoped memory for tpu_custom_call.1']
    #allocation10 [shape = 'u8[16384]{0}', space=vmem, size = 0x4000, scoped, tag = 'output window, operand 2']
    %13 = vsyncpa [#allocation3], 0
    %s14 = scalar_lea.sflag [#allocation3], 1
    %15 = vsyncpa %s14, 0
    %16 = vsyncpa [#allocation6], 0
    %17 = vsyncpa [#allocation4], 0
    %s18 = scalar_lea.sflag [#allocation4], 1
    %19 = vsyncpa %s18, 0
    %20 = vsyncpa [#allocation9], 0
    %s21 = scalar_lea.sflag [#allocation9], 1
    %22 = vsyncpa %s21, 0
    loop: start=0, step=1, limit=6
    $region2: #{tpu_custom_call.1} parent=1 // loop_pre_header
      _
    $region3: #{tpu_custom_call.1} parent=1 // loop_header
      %s24 = sphi 0, %s28
      %p25 = scmp.ge.s32.totalorder %s24, 6
      %s31 = sphi 0, %s43
      %s32 = sphi 0, %s39
      %s33 = sphi 0, %s31
      %s34 = sphi 0, %s32
      %s35 = sphi 0, %s33
      %s36 = sphi 0, %s34
      %s48 = sphi 0, %s50
      %s51 = sphi 0, %s48
      %s52 = sphi 0, %s51
      %s68 = sphi 0, %s52
      %s72 = sphi 0, %s72
      %s74 = sphi 0, %s72
      %s75 = sphi 0, %s74
      %s89 = sphi 0, %s75
      %s93 = sphi 0, %s93
      %s95 = sphi 0, %s93
      %s96 = sphi 0, %s95
      %s110 = sphi 0, %s96
      %s114 = sphi 0, %s114
      %s116 = sphi 0, %s114
      %s117 = sphi 0, %s116
      %s131 = sphi 0, %s117
      %s135 = sphi 0, %s135
      %s137 = sphi 0, %s135
      %s138 = sphi 0, %s137
      %s152 = sphi 0, %s138
      %s160 = sphi 0, %s162
      %s163 = sphi 0, %s160
      %s164 = sphi 0, %s163
      %s180 = sphi 0, %s164
      %s188 = sphi 0, %s190
      %s191 = sphi 0, %s188
      %s192 = sphi 0, %s191
      %s208 = sphi 0, %s192
      %s216 = sphi 0, %s218
      %s219 = sphi 0, %s216
      %s220 = sphi 0, %s219
      %s236 = sphi 0, %s220
    $region4: #{tpu_custom_call.1} parent=1 // loop_header_branch
      %27 = sbr.rel (%p25) target = $region8
    $region5: #{tpu_custom_call.1} parent=1 // loop_body
      %s29 = ssub.s32 %s24, 1
      %s30 = ssub.s32 %s24, 2
      %s37 = sadd.s32 1, %s32
      %p38 = scmp.ge.s32.totalorder %s37, 2
      %s39 = scalar_select %p38, 0, %s37
      %s40 = sadd.s32 1, %s31
      %s41 = scalar_select %p38, %s40, %s31
      %p42 = scmp.ge.s32.totalorder %s41, 2
      %s43 = scalar_select %p42, 0, %s41
      %s44 = ssub.s32 %s31, %s43
      %s45 = ssub.s32 %s32, %s39
      %s46 = sor.u32 %s44, %s45
      %p47 = scmp.eq.s32.totalorder %s46, 0
      %s49 = sadd.s32 %s48, 1
      %s50 = scalar_select %p47, %s48, %s49
      %p53 = pneg %p47
      %p54 = scmp.eq.s32.totalorder %s24, 3
      %p55 = por %p53, %p54
      %p56 = scmp.ne.s32.totalorder %s48, %s51
      %p57 = scmp.eq.s32.totalorder %s24, 0
      %p58 = por %p56, %p57
      %p59 = scmp.ne.s32.totalorder %s48, %s51
      %p60 = scmp.eq.s32.totalorder %s29, 3
      %p61 = por %p59, %p60
      %p62 = scmp.ne.s32.totalorder %s51, %s52
      %p63 = scmp.eq.s32.totalorder %s29, 0
      %p64 = por %p62, %p63
      %p65 = scmp.ne.s32.totalorder %s51, %s52
      %p66 = scmp.eq.s32.totalorder %s30, 3
      %p67 = por %p65, %p66
      %p69 = scmp.ne.s32.totalorder %s52, %s68
      %p70 = scmp.eq.s32.totalorder %s30, 0
      %p71 = por %p69, %p70
      %s73 = sadd.s32 %s72, 1
      %p76 = scmp.eq.s32.totalorder %s24, 3
      %p77 = scmp.ne.s32.totalorder %s72, %s74
      %p78 = scmp.eq.s32.totalorder %s24, 0
      %p79 = por %p77, %p78
      %p80 = scmp.ne.s32.totalorder %s72, %s74
      %p81 = scmp.eq.s32.totalorder %s29, 3
      %p82 = por %p80, %p81
      %p83 = scmp.ne.s32.totalorder %s74, %s75
      %p84 = scmp.eq.s32.totalorder %s29, 0
      %p85 = por %p83, %p84
      %p86 = scmp.ne.s32.totalorder %s74, %s75
      %p87 = scmp.eq.s32.totalorder %s30, 3
      %p88 = por %p86, %p87
      %p90 = scmp.ne.s32.totalorder %s75, %s89
      %p91 = scmp.eq.s32.totalorder %s30, 0
      %p92 = por %p90, %p91
      %s94 = sadd.s32 %s93, 1
      %p97 = scmp.eq.s32.totalorder %s24, 3
      %p98 = scmp.ne.s32.totalorder %s93, %s95
      %p99 = scmp.eq.s32.totalorder %s24, 0
      %p100 = por %p98, %p99
      %p101 = scmp.ne.s32.totalorder %s93, %s95
      %p102 = scmp.eq.s32.totalorder %s29, 3
      %p103 = por %p101, %p102
      %p104 = scmp.ne.s32.totalorder %s95, %s96
      %p105 = scmp.eq.s32.totalorder %s29, 0
      %p106 = por %p104, %p105
      %p107 = scmp.ne.s32.totalorder %s95, %s96
      %p108 = scmp.eq.s32.totalorder %s30, 3
      %p109 = por %p107, %p108
      %p111 = scmp.ne.s32.totalorder %s96, %s110
      %p112 = scmp.eq.s32.totalorder %s30, 0
      %p113 = por %p111, %p112
      %s115 = sadd.s32 %s114, 1
      %p118 = scmp.eq.s32.totalorder %s24, 3
      %p119 = scmp.ne.s32.totalorder %s114, %s116
      %p120 = scmp.eq.s32.totalorder %s24, 0
      %p121 = por %p119, %p120
      %p122 = scmp.ne.s32.totalorder %s114, %s116
      %p123 = scmp.eq.s32.totalorder %s29, 3
      %p124 = por %p122, %p123
      %p125 = scmp.ne.s32.totalorder %s116, %s117
      %p126 = scmp.eq.s32.totalorder %s29, 0
      %p127 = por %p125, %p126
      %p128 = scmp.ne.s32.totalorder %s116, %s117
      %p129 = scmp.eq.s32.totalorder %s30, 3
      %p130 = por %p128, %p129
      %p132 = scmp.ne.s32.totalorder %s117, %s131
      %p133 = scmp.eq.s32.totalorder %s30, 0
      %p134 = por %p132, %p133
      %s136 = sadd.s32 %s135, 1
      %p139 = scmp.eq.s32.totalorder %s24, 3
      %p140 = scmp.ne.s32.totalorder %s135, %s137
      %p141 = scmp.eq.s32.totalorder %s24, 0
      %p142 = por %p140, %p141
      %p143 = scmp.ne.s32.totalorder %s135, %s137
      %p144 = scmp.eq.s32.totalorder %s29, 3
      %p145 = por %p143, %p144
      %p146 = scmp.ne.s32.totalorder %s137, %s138
      %p147 = scmp.eq.s32.totalorder %s29, 0
      %p148 = por %p146, %p147
      %p149 = scmp.ne.s32.totalorder %s137, %s138
      %p150 = scmp.eq.s32.totalorder %s30, 3
      %p151 = por %p149, %p150
      %p153 = scmp.ne.s32.totalorder %s138, %s152
      %p154 = scmp.eq.s32.totalorder %s30, 0
      %p155 = por %p153, %p154
      %s156 = ssub.s32 %s31, %s43
      %s157 = ssub.s32 %s32, %s39
      %s158 = sor.u32 %s156, %s157
      %p159 = scmp.eq.s32.totalorder %s158, 0
      %s161 = sadd.s32 %s160, 1
      %s162 = scalar_select %p159, %s160, %s161
      %p165 = pneg %p159
      %p166 = scmp.eq.s32.totalorder %s24, 3
      %p167 = por %p165, %p166
      %p168 = scmp.ne.s32.totalorder %s160, %s163
      %p169 = scmp.eq.s32.totalorder %s24, 0
      %p170 = por %p168, %p169
      %p171 = scmp.ne.s32.totalorder %s160, %s163
      %p172 = scmp.eq.s32.totalorder %s29, 3
      %p173 = por %p171, %p172
      %p174 = scmp.ne.s32.totalorder %s163, %s164
      %p175 = scmp.eq.s32.totalorder %s29, 0
      %p176 = por %p174, %p175
      %p177 = scmp.ne.s32.totalorder %s163, %s164
      %p178 = scmp.eq.s32.totalorder %s30, 3
      %p179 = por %p177, %p178
      %p181 = scmp.ne.s32.totalorder %s164, %s180
      %p182 = scmp.eq.s32.totalorder %s30, 0
      %p183 = por %p181, %p182
      %s184 = ssub.s32 %s31, %s43
      %s185 = ssub.s32 %s32, %s39
      %s186 = sor.u32 %s184, %s185
      %p187 = scmp.eq.s32.totalorder %s186, 0
      %s189 = sadd.s32 %s188, 1
      %s190 = scalar_select %p187, %s188, %s189
      %p193 = pneg %p187
      %p194 = scmp.eq.s32.totalorder %s24, 3
      %p195 = por %p193, %p194
      %p196 = scmp.ne.s32.totalorder %s188, %s191
      %p197 = scmp.eq.s32.totalorder %s24, 0
      %p198 = por %p196, %p197
      %p199 = scmp.ne.s32.totalorder %s188, %s191
      %p200 = scmp.eq.s32.totalorder %s29, 3
      %p201 = por %p199, %p200
      %p202 = scmp.ne.s32.totalorder %s191, %s192
      %p203 = scmp.eq.s32.totalorder %s29, 0
      %p204 = por %p202, %p203
      %p205 = scmp.ne.s32.totalorder %s191, %s192
      %p206 = scmp.eq.s32.totalorder %s30, 3
      %p207 = por %p205, %p206
      %p209 = scmp.ne.s32.totalorder %s192, %s208
      %p210 = scmp.eq.s32.totalorder %s30, 0
      %p211 = por %p209, %p210
      %s212 = ssub.s32 %s31, %s43
      %s213 = ssub.s32 %s32, %s39
      %s214 = sor.u32 %s212, %s213
      %p215 = scmp.eq.s32.totalorder %s214, 0
      %s217 = sadd.s32 %s216, 1
      %s218 = scalar_select %p215, %s216, %s217
      %p221 = pneg %p215
      %p222 = scmp.eq.s32.totalorder %s24, 3
      %p223 = por %p221, %p222
      %p224 = scmp.ne.s32.totalorder %s216, %s219
      %p225 = scmp.eq.s32.totalorder %s24, 0
      %p226 = por %p224, %p225
      %p227 = scmp.ne.s32.totalorder %s216, %s219
      %p228 = scmp.eq.s32.totalorder %s29, 3
      %p229 = por %p227, %p228
      %p230 = scmp.ne.s32.totalorder %s219, %s220
      %p231 = scmp.eq.s32.totalorder %s29, 0
      %p232 = por %p230, %p231
      %p233 = scmp.ne.s32.totalorder %s219, %s220
      %p234 = scmp.eq.s32.totalorder %s30, 3
      %p235 = por %p233, %p234
      %p237 = scmp.ne.s32.totalorder %s220, %s236
      %p238 = scmp.eq.s32.totalorder %s30, 0
      %p239 = por %p237, %p238
      %p240 = scmp.le.s32.totalorder 1, %s24
      %p241 = scmp.lt.s32.totalorder %s24, 5
      %p242 = pnand %p240, %p241
      %p243 = pneg %p242
      // Predicated region
      $region9: #{tpu_custom_call.1} parent=5 // pred_check
        _
      $region10: #{tpu_custom_call.1} parent=5 // pred_check_branch
        %245 = sbr.rel (%p242) target = $region12
      $region11: #{tpu_custom_call.1} parent=5 // pred_region
        %s246 = ssub.s32 %s24, 1
        // Predicated region
        $region13: #{tpu_custom_call.1} parent=11 // pred_check
          %p247 = pneg %p85
        $region14: #{tpu_custom_call.1} parent=11 // pred_check_branch
          %249 = sbr.rel (%p247) target = $region16
        $region15: #{tpu_custom_call.1} parent=11 // pred_region
          _
        $region16: #{tpu_custom_call.1} parent=11 // pred_fallthru
          _
        // Predicated region
        $region17: #{tpu_custom_call.1} parent=11 // pred_check
          %p250 = pneg %p106
        $region18: #{tpu_custom_call.1} parent=11 // pred_check_branch
          %252 = sbr.rel (%p250) target = $region20
        $region19: #{tpu_custom_call.1} parent=11 // pred_region
          _
        $region20: #{tpu_custom_call.1} parent=11 // pred_fallthru
          _
        // Predicated region
        $region21: #{tpu_custom_call.1} parent=11 // pred_check
          %p253 = pneg %p127
        $region22: #{tpu_custom_call.1} parent=11 // pred_check_branch
          %255 = sbr.rel (%p253) target = $region24
        $region23: #{tpu_custom_call.1} parent=11 // pred_region
          %s257 = ssub.s32 1024, 1024
          %258 = vsyncadd [#allocation6], %s257
          %s259 = sshll.u32 [#allocation5], 4
          %s260 = int_to_ptr.vmem [resolvable:$true] %s259
          %265 = dma.hbm_to_vmem [thread:$0]  %s3, 1024, %s260, [#allocation6], 128, 128, 8
        $region24: #{tpu_custom_call.1} parent=11 // pred_fallthru
          _
        // Predicated region
        $region25: #{tpu_custom_call.1} parent=11 // pred_check
          %p266 = pneg %p148
        $region26: #{tpu_custom_call.1} parent=11 // pred_check_branch
          %268 = sbr.rel (%p266) target = $region28
        $region27: #{tpu_custom_call.1} parent=11 // pred_region
          _
        $region28: #{tpu_custom_call.1} parent=11 // pred_fallthru
          _
      $region12: #{tpu_custom_call.1} parent=5 // pred_fallthru
        _
      %p269 = scmp.lt.s32.totalorder %s24, 4
      // Predicated region
      $region29: #{tpu_custom_call.1} parent=5 // pred_check
        %p270 = pneg %p269
      $region30: #{tpu_custom_call.1} parent=5 // pred_check_branch
        %272 = sbr.rel (%p270) target = $region32
      $region31: #{tpu_custom_call.1} parent=5 // pred_region
        // Predicated region
        $region33: #{tpu_custom_call.1} parent=31 // pred_check
          %p273 = pneg %p58
        $region34: #{tpu_custom_call.1} parent=31 // pred_check_branch
          %275 = sbr.rel (%p273) target = $region36
        $region35: #{tpu_custom_call.1} parent=31 // pred_region
          %s276 = sand.u32 %s48, 1
          %s277 = scalar_lea.sflag [#allocation3], %s276
          %s278 = sand.u32 %s48, 1
          %s279 = smul.addr %s278, 8
          %s280 = scalar_lea.vmem [#allocation2], %s279
          %s282 = ssub.s32 128, 128
          %283 = vsyncadd %s277, %s282
          %s284 = smul.addr %s31, 2
          %s285 = sadd.s32 %s32, %s284
          %s286 = smul.addr %s285, 128
          %s287 = scalar_lea.hbm %s0, %s286
          %s289 = sshll.u32 %s280, 4
          %s290 = int_to_ptr.vmem [resolvable:$true] %s289
          %292 = dma.hbm_to_vmem [thread:$0]  %s287, 128, %s290, %s277
        $region36: #{tpu_custom_call.1} parent=31 // pred_fallthru
          _
      $region32: #{tpu_custom_call.1} parent=5 // pred_fallthru
        _
      %p293 = scmp.le.s32.totalorder 1, %s24
      %p294 = scmp.lt.s32.totalorder %s24, 5
      %p295 = pnand %p293, %p294
      %p296 = pneg %p295
      // Predicated region
      $region37: #{tpu_custom_call.1} parent=5 // pred_check
        _
      $region38: #{tpu_custom_call.1} parent=5 // pred_check_branch
        %298 = sbr.rel (%p295) target = $region40
      $region39: #{tpu_custom_call.1} parent=5 // pred_region
        %s299 = ssub.s32 %s24, 1
        %s300 = sand.u32 %s51, 1
        %s301 = scalar_lea.sflag [#allocation3], %s300
        %s302 = sand.u32 %s51, 1
        %s303 = smul.addr %s302, 8
        %s304 = scalar_lea.vmem [#allocation2], %s303
        // Predicated region
        $region41: #{tpu_custom_call.1} parent=39 // pred_check
          %p305 = pneg %p64
        $region42: #{tpu_custom_call.1} parent=39 // pred_check_branch
          %307 = sbr.rel (%p305) target = $region44
        $region43: #{tpu_custom_call.1} parent=39 // pred_region
          %308 = dma.done %s301, 128
        $region44: #{tpu_custom_call.1} parent=39 // pred_fallthru
          _
        // Predicated region
        $region45: #{tpu_custom_call.1} parent=39 // pred_check
          %p309 = pneg %p127
        $region46: #{tpu_custom_call.1} parent=39 // pred_check_branch
          %311 = sbr.rel (%p309) target = $region48
        $region47: #{tpu_custom_call.1} parent=39 // pred_region
          %312 = dma.done [#allocation6], 1024
        $region48: #{tpu_custom_call.1} parent=39 // pred_fallthru
          _
        %s313 = sand.u32 %s51, 1
        %s314 = scalar_lea.sflag [#allocation3], %s313
        %s315 = sand.u32 %s51, 1
        %s316 = smul.addr %s315, 8
        %s317 = scalar_lea.vmem [#allocation2], %s316
        %p318 = pneg %p64
        %p319 = pneg %p61
        %p320 = pneg %p85
        %p321 = pneg %p82
        %p322 = pneg %p106
        %p323 = pneg %p103
        %p324 = pneg %p127
        %p325 = pneg %p124
        %p326 = pneg %p148
        %p327 = pneg %p145
        %p328 = pneg %p176
        %p329 = pneg %p173
        %s330 = sand.u32 %s163, 1
        %s331 = scalar_lea.sflag [#allocation4], %s330
        %s332 = sand.u32 %s163, 1
        %s333 = smul.addr %s332, 16
        %s334 = scalar_lea.vmem [#allocation7], %s333
        %p335 = pneg %p204
        %p336 = pneg %p201
        %s337 = sand.u32 %s29, 1
        %s338 = scalar_lea.sflag [#allocation9], %s337
        %s339 = sand.u32 %s191, 1
        %s340 = smul.addr %s339, 16
        %s341 = scalar_lea.vmem [#allocation8], %s340
        %p342 = pneg %p232
        %p343 = pneg %p229
        %s344 = sand.u32 %s29, 1
        %s345 = scalar_lea.sflag [#allocation9], %s344
        %s346 = sand.u32 %s219, 1
        %s347 = smul.addr %s346, 16
        %s348 = scalar_lea.vmem [#allocation10], %s347
        %v350 = vld [vmem:[%s304] sm:$0xff]
        %v351 = vld [vmem:[%s1] sm:$0x1]
        %v352 = vld [vmem:[%s2] sm:$0x1]
        %vm353 = vcmask 523264
        %v354 = vsel %vm353, %v350, 0.0
        %355 = vadd.xlane.f32.xlu0 %v354
        %v356 = vpop.xlane.xlu0 %355
        %v357 = vrcp.pop 64.0
        %v358 = vmul.f32 %v356, %v357
        %v359 = vsub.f32 %v350, %v358
        %v360 = vmul.f32 %v359, %v359
        %v361 = vsel %vm353, %v360, 0.0
        %362 = vadd.xlane.f32.xlu0 %v361
        %v363 = vpop.xlane.xlu0 %362
        %v364 = vmul.f32 %v363, %v357
        %v365 = vadd.f32 %v364, 1e-05
        %v366 = vrsqrt.pop %v365
        %v367 = vmul.f32 %v359, %v366
        %v369 = vlaneseq
        %v370 = vshrl.u32 %v369, 7
        %v371 = vsub.s32 0, %v370
        %v372 = vrot.slane %v351, %v371
        %v374 = vmul.f32 %v367, %v372
        %v376 = vlaneseq
        %v377 = vshrl.u32 %v376, 7
        %v378 = vsub.s32 0, %v377
        %v379 = vrot.slane %v352, %v378
        %v381 = vadd.f32 %v374, %v379
        %v382 = vpack.c.bf16 %v381, %v381
        %v383 = vld [vmem:[#allocation5] sm:$0xff]
        %v384 = vld [vmem:[#allocation5 + $0x8] sm:$0xff]
        %v385 = vld [vmem:[#allocation5 + $0x10] sm:$0xff]
        %v386 = vld [vmem:[#allocation5 + $0x18] sm:$0xff]
        %v387 = vld [vmem:[#allocation5 + $0x20] sm:$0xff]
        %v388 = vld [vmem:[#allocation5 + $0x28] sm:$0xff]
        %v389 = vld [vmem:[#allocation5 + $0x30] sm:$0xff]
        %v390 = vld [vmem:[#allocation5 + $0x38] sm:$0xff]
        %v391 = vld [vmem:[%s4] sm:$0x3]
        %v393 = vlaneseq
        %v394 = vshrl.u32 %v393, 7
        %v395 = vsub.s32 0, %v394
        %v396 = vrot.slane %v391, %v395
        %v397 = vlaneseq
        %v398 = vshrl.u32 %v397, 7
        %v399 = vsub.s32 1, %v398
        %v400 = vrot.slane %v391, %v399
        %v411 = vunpack.c.l.b16 %v383
        %v412 = vunpack.c.h.b16 %v383
        %v413 = vunpack.c.l.b16 %v384
        %v414 = vunpack.c.h.b16 %v384
        %v415 = vunpack.c.l.b16 %v385
        %v416 = vunpack.c.h.b16 %v385
        %v417 = vunpack.c.l.b16 %v386
        %v418 = vunpack.c.h.b16 %v386
        %v419 = vunpack.c.l.b16 %v387
        %v420 = vunpack.c.h.b16 %v387
        %v421 = vunpack.c.l.b16 %v388
        %v422 = vunpack.c.h.b16 %v388
        %v423 = vunpack.c.l.b16 %v389
        %v424 = vunpack.c.h.b16 %v389
        %v425 = vunpack.c.l.b16 %v390
        %v426 = vunpack.c.h.b16 %v390
        %v427 = vpack.c.b16 %v413, %v411
        %v428 = vpack.c.b16 %v414, %v412
        %v429 = vpack.c.b16 %v417, %v415
        %v430 = vpack.c.b16 %v418, %v416
        %v431 = vpack.c.b16 %v421, %v419
        %v432 = vpack.c.b16 %v422, %v420
        %v433 = vpack.c.b16 %v425, %v423
        %v434 = vpack.c.b16 %v426, %v424
        %v444 = vsel %vm353, %v382, 0
        %446 = vmatprep.subr.bf16.mxu0 %v428
        %447 = vmatpush1.bf16.msra.mxu0 %v427
        %448 = vmatprep.subr.bf16.mxu0 %v430
        %449 = vmatpush1.bf16.msra.mxu0 %v429
        %450 = vmatprep.subr.bf16.mxu0 %v432
        %451 = vmatpush1.bf16.msra.mxu0 %v431
        %452 = vmatprep.subr.bf16.mxu0 %v434
        %453 = vmatpush1.bf16.msra.mxu0 %v433
        %454 = vmatprep.subr.bf16.mxu0 0
        %455 = vmatpush1.bf16.msra.mxu0 0
        %456 = vmatprep.subr.bf16.mxu0 0
        %457 = vmatpush1.bf16.msra.mxu0 0
        %458 = vmatprep.subr.bf16.mxu0 0
        %459 = vmatpush1.bf16.msra.mxu0 0
        %460 = vmatprep.subr.bf16.mxu0 0
        %461 = vmatpush1.bf16.msra.mxu0 0
        %462 = vmatprep.subr.bf16.mxu0 0
        %463 = vmatpush1.bf16.msra.mxu0 0
        %464 = vmatprep.subr.bf16.mxu0 0
        %465 = vmatpush1.bf16.msra.mxu0 0
        %466 = vmatprep.subr.bf16.mxu0 0
        %467 = vmatpush1.bf16.msra.mxu0 0
        %468 = vmatprep.subr.bf16.mxu0 0
        %469 = vmatpush1.bf16.msra.mxu0 0
        %470 = vmatprep.subr.bf16.mxu0 0
        %471 = vmatpush1.bf16.msra.mxu0 0
        %472 = vmatprep.subr.bf16.mxu0 0
        %473 = vmatpush1.bf16.msra.mxu0 0
        %474 = vmatprep.subr.bf16.mxu0 0
        %475 = vmatpush1.bf16.msra.mxu0 0
        %476 = vmatprep.subr.bf16.mxu0 0
        %477 = vmatpush1.bf16.msra.mxu0 0
        %478 = vmatprep.mubr.bf16.mxu0 0
        %479 = vmatmul.mubr.bf16.gmra.mrb[0].mxu0 %v444
        %v480 = vpop.f32.mrb[0].mxu0
        %v481 = vadd.f32 %v396, %v480
        %v482 = vpop.f32.mrb[0].mxu0
        %v483 = vadd.f32 %v400, %v482
        %v484 = vpop.f32.mrb[0].mxu0
        %v485 = vpop.f32.mrb[0].mxu0
        %486 = vdwg.mxu0
        %v487 = vpack.c.bf16 %v481, %v481
        %vm488 = vcmask 125952
        %489 = vst.msk [vmem:[%s334] sm:$0xf] %vm488, %v487
        %v491 = vunpack.c.l.b16 %v487
        %v492 = vpack.c.b16 %v491, %v491
        %493 = vrot.lane.b32.xlu0 %v492, 64
        %v494 = vpop.permute.xlu0 %493
        %496 = vst.msk [vmem:[%s341] sm:$0xf] %vm488, %v494
        %v497 = vpack.c.bf16 %v483, %v483
        %498 = vst.msk [vmem:[%s348] sm:$0xf] %vm488, %v497
        %499 = vrot.lane.b32.xlu0 %v492, 112
        %v500 = vpop.permute.xlu0 %499
        %s502 = scalar_lea.vmem %s334, 4 [#allocation7]
        %503 = vst.msk [vmem:[%s502] sm:$0xf] %vm488, %v500
        %504 = vrot.lane.b32.xlu0 %v492, 48
        %v505 = vpop.permute.xlu0 %504
        %s507 = scalar_lea.vmem %s341, 4 [#allocation8]
        %508 = vst.msk [vmem:[%s507] sm:$0xf] %vm488, %v505
        %v510 = vunpack.c.l.b16 %v497
        %v511 = vpack.c.b16 %v510, %v510
        %512 = vrot.lane.b32.xlu0 %v511, 112
        %v513 = vpop.permute.xlu0 %512
        %s515 = scalar_lea.vmem %s348, 4 [#allocation10]
        %516 = vst.msk [vmem:[%s515] sm:$0xf] %vm488, %v513
        %517 = vrot.lane.b32.xlu0 %v492, 96
        %v518 = vpop.permute.xlu0 %517
        %s520 = scalar_lea.vmem %s334, 8 [#allocation7]
        %521 = vst.msk [vmem:[%s520] sm:$0xf] %vm488, %v518
        %522 = vrot.lane.b32.xlu0 %v492, 32
        %v523 = vpop.permute.xlu0 %522
        %s525 = scalar_lea.vmem %s341, 8 [#allocation8]
        %526 = vst.msk [vmem:[%s525] sm:$0xf] %vm488, %v523
        %527 = vrot.lane.b32.xlu0 %v511, 96
        %v528 = vpop.permute.xlu0 %527
        %s530 = scalar_lea.vmem %s348, 8 [#allocation10]
        %531 = vst.msk [vmem:[%s530] sm:$0xf] %vm488, %v528
        %532 = vrot.lane.b32.xlu0 %v492, 80
        %v533 = vpop.permute.xlu0 %532
        %s535 = scalar_lea.vmem %s334, 12 [#allocation7]
        %536 = vst.msk [vmem:[%s535] sm:$0xf] %vm488, %v533
        %537 = vrot.lane.b32.xlu0 %v492, 16
        %v538 = vpop.permute.xlu0 %537
        %s540 = scalar_lea.vmem %s341, 12 [#allocation8]
        %541 = vst.msk [vmem:[%s540] sm:$0xf] %vm488, %v538
        %542 = vrot.lane.b32.xlu0 %v511, 80
        %v543 = vpop.permute.xlu0 %542
        %s545 = scalar_lea.vmem %s348, 12 [#allocation10]
        %546 = vst.msk [vmem:[%s545] sm:$0xf] %vm488, %v543
        %s547 = sand.u32 %s163, 1
        %s548 = scalar_lea.sflag [#allocation4], %s547
        %s549 = sand.u32 %s163, 1
        %s550 = smul.addr %s549, 16
        %s551 = scalar_lea.vmem [#allocation7], %s550
        %s552 = sand.u32 %s29, 1
        %s553 = scalar_lea.sflag [#allocation9], %s552
        %s554 = sand.u32 %s191, 1
        %s555 = smul.addr %s554, 16
        %s556 = scalar_lea.vmem [#allocation8], %s555
        %s557 = sand.u32 %s29, 1
        %s558 = scalar_lea.sflag [#allocation9], %s557
        %s559 = sand.u32 %s219, 1
        %s560 = smul.addr %s559, 16
        %s561 = scalar_lea.vmem [#allocation10], %s560
        // Predicated region
        $region49: #{tpu_custom_call.1} parent=39 // pred_check
          %p562 = pneg %p173
        $region50: #{tpu_custom_call.1} parent=39 // pred_check_branch
          %564 = sbr.rel (%p562) target = $region52
        $region51: #{tpu_custom_call.1} parent=39 // pred_region
          %s566 = ssub.s32 256, 256
          %567 = vsyncadd %s548, %s566
          %s568 = smul.addr %s33, 8
          %s569 = sadd.s32 %s34, %s568
          %s570 = smul.addr %s569, 64
          %s571 = scalar_lea.hbm %s5, %s570
          %s572 = sshll.u32 %s551, 4
          %s573 = int_to_ptr.vmem [resolvable:$true] %s572
          %578 = dma.vmem_to_hbm [thread:$0]  %s573, 256, %s571, %s548, 64, 128, 4
        $region52: #{tpu_custom_call.1} parent=39 // pred_fallthru
          _
        // Predicated region
        $region53: #{tpu_custom_call.1} parent=39 // pred_check
          %p579 = pneg %p201
        $region54: #{tpu_custom_call.1} parent=39 // pred_check_branch
          %581 = sbr.rel (%p579) target = $region56
        $region55: #{tpu_custom_call.1} parent=39 // pred_region
          %s583 = ssub.s32 256, 256
          %584 = vsyncadd %s553, %s583
          %s585 = smul.addr %s33, 8
          %s586 = sadd.s32 %s34, %s585
          %s587 = smul.addr %s586, 64
          %s588 = scalar_lea.hbm %s6, %s587
          %s589 = sshll.u32 %s556, 4
          %s590 = int_to_ptr.vmem [resolvable:$true] %s589
          %595 = dma.vmem_to_hbm [thread:$0]  %s590, 256, %s588, %s553, 64, 128, 4
        $region56: #{tpu_custom_call.1} parent=39 // pred_fallthru
          _
        // Predicated region
        $region57: #{tpu_custom_call.1} parent=39 // pred_check
          %p596 = pneg %p229
        $region58: #{tpu_custom_call.1} parent=39 // pred_check_branch
          %598 = sbr.rel (%p596) target = $region60
        $region59: #{tpu_custom_call.1} parent=39 // pred_region
          %s600 = ssub.s32 256, 256
          %601 = vsyncadd %s558, %s600
          %s602 = smul.addr %s33, 8
          %s603 = sadd.s32 %s34, %s602
          %s604 = smul.addr %s603, 64
          %s605 = scalar_lea.hbm %s7, %s604
          %s606 = sshll.u32 %s561, 4
          %s607 = int_to_ptr.vmem [resolvable:$true] %s606
          %612 = dma.vmem_to_hbm [thread:$0]  %s607, 256, %s605, %s558, 64, 128, 4
        $region60: #{tpu_custom_call.1} parent=39 // pred_fallthru
          _
      $region40: #{tpu_custom_call.1} parent=5 // pred_fallthru
        _
      %p613 = scmp.le.s32.totalorder 2, %s24
      // Predicated region
      $region61: #{tpu_custom_call.1} parent=5 // pred_check
        %p614 = pneg %p613
      $region62: #{tpu_custom_call.1} parent=5 // pred_check_branch
        %616 = sbr.rel (%p614) target = $region64
      $region63: #{tpu_custom_call.1} parent=5 // pred_region
        %s617 = ssub.s32 %s24, 2
        // Predicated region
        $region65: #{tpu_custom_call.1} parent=63 // pred_check
          %p618 = pneg %p179
        $region66: #{tpu_custom_call.1} parent=63 // pred_check_branch
          %620 = sbr.rel (%p618) target = $region68
        $region67: #{tpu_custom_call.1} parent=63 // pred_region
          %s621 = sand.u32 %s164, 1
          %s622 = scalar_lea.sflag [#allocation4], %s621
          %s623 = sand.u32 %s164, 1
          %s624 = smul.addr %s623, 16
          %s625 = scalar_lea.vmem [#allocation7], %s624
          %626 = dma.done %s622, 256
        $region68: #{tpu_custom_call.1} parent=63 // pred_fallthru
          _
        // Predicated region
        $region69: #{tpu_custom_call.1} parent=63 // pred_check
          %p627 = pneg %p207
        $region70: #{tpu_custom_call.1} parent=63 // pred_check_branch
          %629 = sbr.rel (%p627) target = $region72
        $region71: #{tpu_custom_call.1} parent=63 // pred_region
          %s630 = sand.u32 %s30, 1
          %s631 = scalar_lea.sflag [#allocation9], %s630
          %s632 = sand.u32 %s192, 1
          %s633 = smul.addr %s632, 16
          %s634 = scalar_lea.vmem [#allocation8], %s633
          %635 = dma.done %s631, 256
        $region72: #{tpu_custom_call.1} parent=63 // pred_fallthru
          _
        // Predicated region
        $region73: #{tpu_custom_call.1} parent=63 // pred_check
          %p636 = pneg %p235
        $region74: #{tpu_custom_call.1} parent=63 // pred_check_branch
          %638 = sbr.rel (%p636) target = $region76
        $region75: #{tpu_custom_call.1} parent=63 // pred_region
          %s639 = sand.u32 %s30, 1
          %s640 = scalar_lea.sflag [#allocation9], %s639
          %s641 = sand.u32 %s220, 1
          %s642 = smul.addr %s641, 16
          %s643 = scalar_lea.vmem [#allocation10], %s642
          %644 = dma.done %s640, 256
        $region76: #{tpu_custom_call.1} parent=63 // pred_fallthru
          _
      $region64: #{tpu_custom_call.1} parent=5 // pred_fallthru
        _
    $region6: #{tpu_custom_call.1} parent=1 // loop_footer
      %s28 = sadd.s32 1, %s24
    $region7: #{tpu_custom_call.1} parent=1 // loop_footer_branch
      %23 = sbr.rel target = $region3
    $region8: #{tpu_custom_call.1} parent=1 // loop_exit
      _
    %645 = vsyncpa [#allocation3], 1
    %s646 = scalar_lea.sflag [#allocation3], 1
    %647 = vsyncpa %s646, 1
    %648 = vsyncpa [#allocation6], 1
    %649 = vsyncpa [#allocation4], 1
    %s650 = scalar_lea.sflag [#allocation4], 1
    %651 = vsyncpa %s650, 1
    %652 = vsyncpa [#allocation9], 1
    %s653 = scalar_lea.sflag [#allocation9], 1
    %654 = vsyncpa %s653, 1

</llo_original>
